<compile_context>
chip_gen: v6e
topology: v6e:2x2x1
jax: 0.10.0
libtpu: 0.0.40
codegen_flags: <defaults>
</compile_context>

<pallas_src>
import functools

import jax
import jax.numpy as jnp
from jax.experimental import pallas as pl
from jax.experimental.pallas import tpu as pltpu

_LANE = 128                  # lanes per vreg
_SUB = 8                     # boxes are spread over 8 sublane groups
_CHUNK = 256                 # in-kernel lane chunk (2 vregs per component plane)
_MAX_BLK_LANES = 16384       # 64 * 16384 * 4 B = 4 MiB of input per grid step
_SPLIT_LANES = 8192          # only force a >=2-step grid if each step keeps >=2 MiB
_VMEM_LIMIT = 32 * 1024 * 1024


def _round_up(x, m):
    return ((x + m - 1) // m) * m


def _choose_block(n):
    """Return (blk_lanes, L): lane tile and padded lane extent (L % blk == 0)."""
    L = _round_up(pl.cdiv(max(n, 1), _SUB), _CHUNK)
    blk = min(_MAX_BLK_LANES, L)
    # Keep >=2 grid steps only when each step still moves >=2 MiB: on v7x the
    # 'parallel' axis then shards across both TensorCores, while on 1-TC chips
    # (v5e/v6e) the extra step costs essentially nothing at that size.
    if L >= 2 * _SPLIT_LANES:
        blk = min(blk, _round_up(pl.cdiv(L, 2), _CHUNK))
    L = _round_up(L, blk)
    return blk, L


def _loss_chunk(planes, loss_type):
    """planes: 8 dense (8, C) f32 slabs [p_cx, p_cy, p_w, p_h, t_cx, t_cy, t_w, t_h].

    Returns the (8, C) per-box loss. All ops run on full 8-sublane vregs.
    """
    p_cx, p_cy, p_w, p_h, t_cx, t_cy, t_w, t_h = planes

    p_hw, p_hh = p_w * 0.5, p_h * 0.5
    t_hw, t_hh = t_w * 0.5, t_h * 0.5
    p_lx, p_rx = p_cx - p_hw, p_cx + p_hw
    p_ly, p_ry = p_cy - p_hh, p_cy + p_hh
    t_lx, t_rx = t_cx - t_hw, t_cx + t_hw
    t_ly, t_ry = t_cy - t_hh, t_cy + t_hh

    tlx = jnp.maximum(p_lx, t_lx)
    tly = jnp.maximum(p_ly, t_ly)
    brx = jnp.minimum(p_rx, t_rx)
    bry = jnp.minimum(p_ry, t_ry)

    inter = (brx - tlx) * (bry - tly)
    en = jnp.logical_and(tlx < brx, tly < bry)
    area_i = jnp.where(en, inter, 0.0)
    area_u = p_w * p_h + t_w * t_h - area_i
    # Exact divide on purpose; see header note about approx-reciprocal error.
    iou = area_i / (area_u + 1e-16)

    if loss_type == "iou":
        return 1.0 - iou * iou
    elif loss_type == "giou":
        clx = jnp.minimum(p_lx, t_lx)
        cly = jnp.minimum(p_ly, t_ly)
        crx = jnp.maximum(p_rx, t_rx)
        cry = jnp.maximum(p_ry, t_ry)
        area_c = (crx - clx) * (cry - cly)
        giou = iou - (area_c - area_u) / jnp.maximum(area_c, 1e-16)
        return 1.0 - jnp.clip(giou, -1.0, 1.0)
    raise ValueError(f"unknown loss_type: {loss_type}")


def _load_planes(box_ref, lane_slice):
    # Row block [8r, 8r+8) of the (64, blk) tile is the dense (8, C) plane of
    # component r (static sublane slice + dynamic lane slice).
    return [box_ref[8 * r:8 * r + 8, lane_slice] for r in range(8)]


def _iou_loss_map_kernel(box_ref, out_ref, *, loss_type, chunk):
    # reduction='none': lane-dense (8, blk) per-box loss, computed chunk-wise
    # so the whole elementwise chain stays resident in vregs.
    blk = out_ref.shape[1]

    @pl.loop(0, blk // chunk)
    def _(c):
        start = pl.multiple_of(c * chunk, chunk)
        sl = pl.ds(start, chunk)
        out_ref[:, sl] = _loss_chunk(_load_planes(box_ref, sl), loss_type)


def _iou_loss_reduce_kernel(box_ref, out_ref, *, loss_type, chunk):
    # reduction='mean'/'sum': per-block (8, 128) partial-sum tile on a
    # 'parallel' grid axis.  Padded boxes contribute exactly 0, so no mask.
    blk = box_ref.shape[1]
    out_ref[...] = jnp.zeros_like(out_ref)

    @pl.loop(0, blk // chunk)
    def _(c):
        start = pl.multiple_of(c * chunk, chunk)
        sl = pl.ds(start, chunk)
        loss = _loss_chunk(_load_planes(box_ref, sl), loss_type)   # (8, chunk)
        part = loss[:, 0:_LANE]
        for k in range(1, chunk // _LANE):                          # static, tile-aligned
            part = part + loss[:, k * _LANE:(k + 1) * _LANE]
        out_ref[...] += part


def iou_loss(pred, target, *, reduction="none", loss_type="iou"):
    """Pallas TPU implementation of YOLOX IOUloss.forward."""
    pred = jnp.asarray(pred, jnp.float32).reshape(-1, 4)
    target = jnp.asarray(target, jnp.float32).reshape(-1, 4)
    assert pred.shape[0] == target.shape[0]
    n = pred.shape[0]

    blk, L = _choose_block(n)
    npad = _SUB * L
    grid = L // blk
    pad = npad - n

    # Pad BOTH pred and target with the same unit box (cx=cy=0, w=h=1): its
    # IoU/GIoU is exactly 1.0 in f32, so the padded per-box loss is exactly
    # 0.0 and the fused sum/mean needs no valid-lane mask.
    if pad:
        pad_rows = jnp.broadcast_to(
            jnp.array([0.0, 0.0, 1.0, 1.0], jnp.float32), (pad, 4))
        pred = jnp.concatenate([pred, pad_rows], axis=0)
        target = jnp.concatenate([target, pad_rows], axis=0)

    # SoA slab (64, L): row 8*r + s holds component r of boxes [s*L, (s+1)*L).
    # Component order: p_cx, p_cy, p_w, p_h, t_cx, t_cy, t_w, t_h.
    # TODO(synk): if the producer kept boxes in component-major (SoA) layout,
    # this wrapper-side transpose (one extra XLA HBM pass) would disappear.
    slab = jnp.concatenate([pred, target], axis=1).T.reshape(64, L)

    params = pltpu.CompilerParams(dimension_semantics=("parallel",),
                                  vmem_limit_bytes=_VMEM_LIMIT)

    if reduction == "none":
        out = pl.pallas_call(
            functools.partial(_iou_loss_map_kernel,
                              loss_type=loss_type, chunk=_CHUNK),
            out_shape=jax.ShapeDtypeStruct((_SUB, L), jnp.float32),
            grid=(grid,),
            in_specs=[pl.BlockSpec((64, blk), lambda i: (0, i))],
            out_specs=pl.BlockSpec((_SUB, blk), lambda i: (0, i)),
            compiler_params=params,
        )(slab)
        return out.reshape(npad)[:n]

    if reduction not in ("mean", "sum"):
        raise ValueError(f"unknown reduction: {reduction}")

    out = pl.pallas_call(
        functools.partial(_iou_loss_reduce_kernel,
                          loss_type=loss_type, chunk=_CHUNK),
        out_shape=jax.ShapeDtypeStruct((_SUB, _LANE * grid), jnp.float32),
        grid=(grid,),
        in_specs=[pl.BlockSpec((64, blk), lambda i: (0, i))],
        out_specs=pl.BlockSpec((_SUB, _LANE), lambda i: (0, i)),
        compiler_params=params,
    )(slab)
    total = jnp.sum(out)
    if reduction == "mean":
        total = total / n          # n is a static Python int
    return total


def _reference(pred, target, reduction="none", loss_type="iou"):
    # Pure-JAX reference mirroring the PyTorch module exactly.
    pred = pred.reshape(-1, 4).astype(jnp.float32)
    target = target.reshape(-1, 4).astype(jnp.float32)
    tl = jnp.maximum(pred[:, :2] - pred[:, 2:] / 2, target[:, :2] - target[:, 2:] / 2)
    br = jnp.minimum(pred[:, :2] + pred[:, 2:] / 2, target[:, :2] + target[:, 2:] / 2)
    area_p = jnp.prod(pred[:, 2:], 1)
    area_g = jnp.prod(target[:, 2:], 1)
    en = jnp.prod((tl < br).astype(jnp.float32), 1)
    area_i = jnp.prod(br - tl, 1) * en
    area_u = area_p + area_g - area_i
    iou = area_i / (area_u + 1e-16)
    if loss_type == "iou":
        loss = 1 - iou ** 2
    else:
        c_tl = jnp.minimum(pred[:, :2] - pred[:, 2:] / 2, target[:, :2] - target[:, 2:] / 2)
        c_br = jnp.maximum(pred[:, :2] + pred[:, 2:] / 2, target[:, :2] + target[:, 2:] / 2)
        area_c = jnp.prod(c_br - c_tl, 1)
        giou = iou - (area_c - area_u) / jnp.maximum(area_c, 1e-16)
        loss = 1 - jnp.clip(giou, -1.0, 1.0)
    if reduction == "mean":
        loss = loss.mean()
    elif reduction == "sum":
        loss = loss.sum()
    return loss


def _make_boxes(key, n):
    k1, k2 = jax.random.split(key)
    return jnp.concatenate(
        [jax.random.uniform(k1, (n, 2)) * 10.0,
         jax.random.uniform(k2, (n, 2)) * 2.0 + 0.5], axis=1)


if __name__ == "__main__":
    key = jax.random.PRNGKey(0)
    kp1, kt1, kp2, kt2 = jax.random.split(key, 4)

    # Case 1: tiny (single grid step).  Case 2: non-multiple-of-padding size
    # that exercises identity-box padding and the reshaped SoA layout.
    cases = [
        (_make_boxes(kp1, 8), _make_boxes(kt1, 8)),
        (_make_boxes(kp2, 300), _make_boxes(kt2, 300)),
    ]
    ok = True
    for pred, target in cases:
        for loss_type in ("iou", "giou"):
            for reduction in ("none", "mean", "sum"):
                got = jax.block_until_ready(
                    iou_loss(pred, target, reduction=reduction, loss_type=loss_type))
                want = _reference(pred, target, reduction=reduction, loss_type=loss_type)
                if not jnp.allclose(got, want, atol=1e-4, rtol=1e-5):
                    ok = False
                    print(f"MISMATCH n={pred.shape[0]} {loss_type}/{reduction}")

    if ok:
        print("KERNEL_OK")
</pallas_src>

<mosaic_0001>
module attributes {stable_mosaic.version = 11 : i64} {
  func.func @_iou_loss_map_kernel(%arg0: i32, %arg1: memref<64x256xf32, #tpu.memory_space<vmem>>, %arg2: memref<8x256xf32, #tpu.memory_space<vmem>>) attributes {dimension_semantics = [#tpu.dimension_semantics<parallel>], iteration_bounds = array<i64: 1>, scalar_prefetch = 0 : i64, scratch_operands = 0 : i64, tpu.core_type = #tpu.core_type<tc>, window_params = [{transform_indices = @transform_0, window_bounds = array<i64: 64, 256>}, {transform_indices = @transform_1, window_bounds = array<i64: 8, 256>}]} {
    %c0_i32 = arith.constant 0 : i32
    %c1_i32 = arith.constant 1 : i32
    %0 = arith.muli %c0_i32, %c1_i32 : i32
    %c0_i32_0 = arith.constant 0 : i32
    %1 = arith.addi %c0_i32_0, %0 : i32
    %c256_i32 = arith.constant 256 : i32
    %2 = arith.muli %1, %c256_i32 : i32
    %3 = tpu.assume_multiple %2, 256 : i32
    %c0 = arith.constant 0 : index
    %4 = arith.index_cast %3 : i32 to index
    %5 = vector.load %arg1[%c0, %4] : memref<64x256xf32, #tpu.memory_space<vmem>>, vector<8x256xf32>
    %c8 = arith.constant 8 : index
    %6 = arith.index_cast %3 : i32 to index
    %7 = vector.load %arg1[%c8, %6] : memref<64x256xf32, #tpu.memory_space<vmem>>, vector<8x256xf32>
    %c16 = arith.constant 16 : index
    %8 = arith.index_cast %3 : i32 to index
    %9 = vector.load %arg1[%c16, %8] : memref<64x256xf32, #tpu.memory_space<vmem>>, vector<8x256xf32>
    %c24 = arith.constant 24 : index
    %10 = arith.index_cast %3 : i32 to index
    %11 = vector.load %arg1[%c24, %10] : memref<64x256xf32, #tpu.memory_space<vmem>>, vector<8x256xf32>
    %c32 = arith.constant 32 : index
    %12 = arith.index_cast %3 : i32 to index
    %13 = vector.load %arg1[%c32, %12] : memref<64x256xf32, #tpu.memory_space<vmem>>, vector<8x256xf32>
    %c40 = arith.constant 40 : index
    %14 = arith.index_cast %3 : i32 to index
    %15 = vector.load %arg1[%c40, %14] : memref<64x256xf32, #tpu.memory_space<vmem>>, vector<8x256xf32>
    %c48 = arith.constant 48 : index
    %16 = arith.index_cast %3 : i32 to index
    %17 = vector.load %arg1[%c48, %16] : memref<64x256xf32, #tpu.memory_space<vmem>>, vector<8x256xf32>
    %c56 = arith.constant 56 : index
    %18 = arith.index_cast %3 : i32 to index
    %19 = vector.load %arg1[%c56, %18] : memref<64x256xf32, #tpu.memory_space<vmem>>, vector<8x256xf32>
    %cst = arith.constant 5.000000e-01 : f32
    %20 = vector.broadcast %cst : f32 to vector<8x256xf32>
    %21 = arith.mulf %9, %20 : vector<8x256xf32>
    %cst_1 = arith.constant 5.000000e-01 : f32
    %22 = vector.broadcast %cst_1 : f32 to vector<8x256xf32>
    %23 = arith.mulf %11, %22 : vector<8x256xf32>
    %cst_2 = arith.constant 5.000000e-01 : f32
    %24 = vector.broadcast %cst_2 : f32 to vector<8x256xf32>
    %25 = arith.mulf %17, %24 : vector<8x256xf32>
    %cst_3 = arith.constant 5.000000e-01 : f32
    %26 = vector.broadcast %cst_3 : f32 to vector<8x256xf32>
    %27 = arith.mulf %19, %26 : vector<8x256xf32>
    %28 = arith.subf %5, %21 : vector<8x256xf32>
    %29 = arith.addf %5, %21 : vector<8x256xf32>
    %30 = arith.subf %7, %23 : vector<8x256xf32>
    %31 = arith.addf %7, %23 : vector<8x256xf32>
    %32 = arith.subf %13, %25 : vector<8x256xf32>
    %33 = arith.addf %13, %25 : vector<8x256xf32>
    %34 = arith.subf %15, %27 : vector<8x256xf32>
    %35 = arith.addf %15, %27 : vector<8x256xf32>
    %36 = arith.maximumf %28, %32 : vector<8x256xf32>
    %37 = arith.maximumf %30, %34 : vector<8x256xf32>
    %38 = arith.minimumf %29, %33 : vector<8x256xf32>
    %39 = arith.minimumf %31, %35 : vector<8x256xf32>
    %40 = arith.subf %38, %36 : vector<8x256xf32>
    %41 = arith.subf %39, %37 : vector<8x256xf32>
    %42 = arith.mulf %40, %41 : vector<8x256xf32>
    %43 = arith.cmpf olt, %36, %38 : vector<8x256xf32>
    %44 = arith.cmpf olt, %37, %39 : vector<8x256xf32>
    %45 = arith.andi %43, %44 : vector<8x256xi1>
    %cst_4 = arith.constant 0.000000e+00 : f32
    %46 = vector.broadcast %cst_4 : f32 to vector<8x256xf32>
    %47 = arith.select %45, %42, %46 : vector<8x256xi1>, vector<8x256xf32>
    %48 = arith.mulf %9, %11 : vector<8x256xf32>
    %49 = arith.mulf %17, %19 : vector<8x256xf32>
    %50 = arith.addf %48, %49 : vector<8x256xf32>
    %51 = arith.subf %50, %47 : vector<8x256xf32>
    %cst_5 = arith.constant 1.000000e-16 : f32
    %52 = vector.broadcast %cst_5 : f32 to vector<8x256xf32>
    %53 = arith.addf %51, %52 : vector<8x256xf32>
    %54 = arith.divf %47, %53 : vector<8x256xf32>
    %55 = arith.mulf %54, %54 : vector<8x256xf32>
    %cst_6 = arith.constant 1.000000e+00 : f32
    %56 = vector.broadcast %cst_6 : f32 to vector<8x256xf32>
    %57 = arith.subf %56, %55 : vector<8x256xf32>
    %c0_7 = arith.constant 0 : index
    %58 = arith.index_cast %3 : i32 to index
    %59 = vector.load %arg2[%c0_7, %58] : memref<8x256xf32, #tpu.memory_space<vmem>>, vector<8x256xf32>
    tpu.vector_store %arg2[%c0_7, %58], %57 {strides = array<i32>} : memref<8x256xf32, #tpu.memory_space<vmem>>, vector<8x256xf32>,
    %c1_i32_8 = arith.constant 1 : i32
    return
  }
  func.func @transform_0(%arg0: i32) -> (i32, i32) {
    %c0_i32 = arith.constant 0 : i32
    %c0_i32_0 = arith.constant 0 : i32
    return %c0_i32, %arg0 : i32, i32
  }
  func.func @transform_1(%arg0: i32) -> (i32, i32) {
    %c0_i32 = arith.constant 0 : i32
    %c0_i32_0 = arith.constant 0 : i32
    return %c0_i32, %arg0 : i32, i32
  }
}

</mosaic_0001>

<llo_original>
// kernel: tpu_custom_call.1
$region0: #{tpu_custom_call.1}
  #allocation0 [shape = 'u32[]', space=smem, size = 0x4, offset = 0x4, fixed_abs, tag = 'smem constant byte address 0x4 - core index']
  #allocation1 [shape = 'u32[144,128]{1,0:T(1,128)}', space=vmem, size = 0x12000, scoped, tag = 'internal scratch']
  %s0 = inlined_call_operand.hbm [shape: f32[64,256], index: 0, kind: input, shape index: {}]
  %s1 = inlined_call_operand.hbm [shape: f32[8,256], index: 1, kind: output, shape index: {}]
  %s2 = sld [smem:[#allocation0]]
  $region18: #{tpu_custom_call.1} parent=0
    _
  %s4 = ssub.s32 1, %s2
  %s5 = scalar_select 0, %s4, %s2
  $region1: #{tpu_custom_call.1} parent=0
    #allocation2 [shape = 'u8[65536]{0}', space=vmem, size = 0x10000, scoped, tag = 'input window, operand 0, single buffered']
    #allocation3 [shape = 's32[1]{0}', space=sflag, size = 0x4, scoped, tag = 'scoped memory for tpu_custom_call.1']
    #allocation4 [shape = 's32[1]{0}', space=sflag, size = 0x4, scoped, tag = 'scoped memory for tpu_custom_call.1']
    #allocation5 [shape = 'u8[8192]{0}', space=vmem, size = 0x2000, scoped, tag = 'output window, operand 0, single buffered']
    %6 = vsyncpa [#allocation3], 0
    %7 = vsyncpa [#allocation4], 0
    // Predicated region
    $region2: #{tpu_custom_call.1} parent=1 // pred_check
      _
    $region3: #{tpu_custom_call.1} parent=1 // pred_check_branch
      %9 = sbr.rel (0) target = $region5
    $region4: #{tpu_custom_call.1} parent=1 // pred_region
      %s11 = ssub.s32 2048, 2048
      %12 = vsyncadd [#allocation3], %s11
      %s13 = sshll.u32 [#allocation2], 4
      %s14 = int_to_ptr.vmem [resolvable:$true] %s13
      %19 = dma.hbm_to_vmem [thread:$0]  %s0, 2048, %s14, [#allocation3], 256, 256, 16
    $region5: #{tpu_custom_call.1} parent=1 // pred_fallthru
      _
    // Predicated region
    $region6: #{tpu_custom_call.1} parent=1 // pred_check
      _
    $region7: #{tpu_custom_call.1} parent=1 // pred_check_branch
      %21 = sbr.rel (0) target = $region9
    $region8: #{tpu_custom_call.1} parent=1 // pred_region
      %22 = dma.done [#allocation3], 2048
    $region9: #{tpu_custom_call.1} parent=1 // pred_fallthru
      _
    %v23 = vld [vmem:[#allocation2] sm:$0xff]
    %v24 = vld [vmem:[#allocation2 + $0x8] sm:$0xff]
    %v25 = vld [vmem:[#allocation2 + $0x10] sm:$0xff]
    %v26 = vld [vmem:[#allocation2 + $0x18] sm:$0xff]
    %v27 = vld [vmem:[#allocation2 + $0x20] sm:$0xff]
    %v28 = vld [vmem:[#allocation2 + $0x28] sm:$0xff]
    %v29 = vld [vmem:[#allocation2 + $0x30] sm:$0xff]
    %v30 = vld [vmem:[#allocation2 + $0x38] sm:$0xff]
    %v31 = vld [vmem:[#allocation2 + $0x40] sm:$0xff]
    %v32 = vld [vmem:[#allocation2 + $0x48] sm:$0xff]
    %v33 = vld [vmem:[#allocation2 + $0x50] sm:$0xff]
    %v34 = vld [vmem:[#allocation2 + $0x58] sm:$0xff]
    %v35 = vld [vmem:[#allocation2 + $0x60] sm:$0xff]
    %v36 = vld [vmem:[#allocation2 + $0x68] sm:$0xff]
    %v37 = vld [vmem:[#allocation2 + $0x70] sm:$0xff]
    %v38 = vld [vmem:[#allocation2 + $0x78] sm:$0xff]
    %v39 = vmul.f32 %v27, 0.5
    %v40 = vmul.f32 %v28, 0.5
    %v41 = vmul.f32 %v29, 0.5
    %v42 = vmul.f32 %v30, 0.5
    %v43 = vmul.f32 %v35, 0.5
    %v44 = vmul.f32 %v36, 0.5
    %v45 = vmul.f32 %v37, 0.5
    %v46 = vmul.f32 %v38, 0.5
    %v47 = vsub.f32 %v23, %v39
    %v48 = vsub.f32 %v24, %v40
    %v49 = vadd.f32 %v23, %v39
    %v50 = vadd.f32 %v24, %v40
    %v51 = vsub.f32 %v25, %v41
    %v52 = vsub.f32 %v26, %v42
    %v53 = vadd.f32 %v25, %v41
    %v54 = vadd.f32 %v26, %v42
    %v55 = vsub.f32 %v31, %v43
    %v56 = vsub.f32 %v32, %v44
    %v57 = vadd.f32 %v31, %v43
    %v58 = vadd.f32 %v32, %v44
    %v59 = vsub.f32 %v33, %v45
    %v60 = vsub.f32 %v34, %v46
    %v61 = vadd.f32 %v33, %v45
    %v62 = vadd.f32 %v34, %v46
    %v63 = vmax.f32 %v47, %v55
    %v64 = vmax.f32 %v48, %v56
    %v65 = vmax.f32 %v51, %v59
    %v66 = vmax.f32 %v52, %v60
    %v67 = vmin.f32 %v49, %v57
    %v68 = vmin.f32 %v50, %v58
    %v69 = vmin.f32 %v53, %v61
    %v70 = vmin.f32 %v54, %v62
    %v71 = vsub.f32 %v67, %v63
    %v72 = vsub.f32 %v68, %v64
    %v73 = vsub.f32 %v69, %v65
    %v74 = vsub.f32 %v70, %v66
    %v75 = vmul.f32 %v71, %v73
    %v76 = vmul.f32 %v72, %v74
    %vm77 = vcmp.lt.f32.partialorder %v63, %v67
    %vm78 = vcmp.lt.f32.partialorder %v64, %v68
    %vm79 = vcmp.lt.f32.partialorder %v65, %v69
    %vm80 = vcmp.lt.f32.partialorder %v66, %v70
    %vm81 = vmand %vm77, %vm79
    %vm82 = vmand %vm78, %vm80
    %v83 = vsel %vm81, %v75, 0.0
    %v84 = vsel %vm82, %v76, 0.0
    %v85 = vmul.f32 %v27, %v29
    %v86 = vmul.f32 %v28, %v30
    %v87 = vmul.f32 %v35, %v37
    %v88 = vmul.f32 %v36, %v38
    %v89 = vadd.f32 %v85, %v87
    %v90 = vadd.f32 %v86, %v88
    %v91 = vsub.f32 %v89, %v83
    %v92 = vsub.f32 %v90, %v84
    %v93 = vadd.f32 %v91, 1e-16
    %v94 = vadd.f32 %v92, 1e-16
    %v95 = vrcp.pop %v93
    %v96 = vmul.f32 %v83, %v95
    %v97 = vrcp.pop %v94
    %v98 = vmul.f32 %v84, %v97
    %v99 = vmul.f32 %v96, %v96
    %v100 = vmul.f32 %v98, %v98
    %v101 = vsub.f32 1.0, %v99
    %v102 = vsub.f32 1.0, %v100
    %103 = vst [vmem:[#allocation5] sm:$0xff] %v101
    %104 = vst [vmem:[#allocation5 + $0x8] sm:$0xff] %v102
    // Predicated region
    $region10: #{tpu_custom_call.1} parent=1 // pred_check
      _
    $region11: #{tpu_custom_call.1} parent=1 // pred_check_branch
      %106 = sbr.rel (0) target = $region13
    $region12: #{tpu_custom_call.1} parent=1 // pred_region
      %s108 = ssub.s32 256, 256
      %109 = vsyncadd [#allocation4], %s108
      %s111 = sshll.u32 [#allocation5], 4
      %s112 = int_to_ptr.vmem [resolvable:$true] %s111
      %114 = dma.vmem_to_hbm [thread:$0]  %s112, 256, %s1, [#allocation4]
    $region13: #{tpu_custom_call.1} parent=1 // pred_fallthru
      _
    // Predicated region
    $region14: #{tpu_custom_call.1} parent=1 // pred_check
      _
    $region15: #{tpu_custom_call.1} parent=1 // pred_check_branch
      %116 = sbr.rel (0) target = $region17
    $region16: #{tpu_custom_call.1} parent=1 // pred_region
      %117 = dma.done [#allocation4], 256
    $region17: #{tpu_custom_call.1} parent=1 // pred_fallthru
      _
    %118 = vsyncpa [#allocation3], 1
    %119 = vsyncpa [#allocation4], 1

</llo_original>
